<compile_context>
chip_gen: v5e
topology: v5e:2x2
jax: 0.10.0
libtpu: 0.0.40
codegen_flags: <defaults>
</compile_context>

<pallas_src>
import jax
import jax.numpy as jnp
from jax import lax
from jax.experimental import pallas as pl
from jax.experimental.pallas import tpu as pltpu

EPS = 1e-5
_LANE = 128


def _make_stats_kernel(ncol):
    """Pass-1 kernel: accumulate per-local-row sum and sum-of-squares of y = x0 + x1.

    ncol: number of 128-lane columns to fold with VALU adds (None -> direct lane reduce
    into a (rows, 1) accumulator).
    """

    def kernel(x0_ref, x1_ref, s1_ref, s2_ref):
        @pl.when(pl.program_id(0) == 0)
        def _init():
            s1_ref[...] = jnp.zeros_like(s1_ref)
            s2_ref[...] = jnp.zeros_like(s2_ref)

        y = x0_ref[...].astype(jnp.float32) + x1_ref[...].astype(jnp.float32)

        if ncol is None:
            # HW not a 128-multiple (or too many columns): let the compiler lane-reduce.
            s1_ref[...] += jnp.sum(y, axis=1, keepdims=True)
            s2_ref[...] += jnp.sum(y * y, axis=1, keepdims=True)
        else:
            # Fold HW into a 128-wide partial with plain VALU adds over static lane slices;
            # the single cross-lane reduce happens once, after the grid, in the wrapper.
            p1 = y[:, 0:_LANE]
            p2 = p1 * p1
            for j in range(1, ncol):
                col = y[:, j * _LANE:(j + 1) * _LANE]
                p1 = p1 + col
                p2 = p2 + col * col
            s1_ref[...] += p1
            s2_ref[...] += p2

    return kernel


def _normalize_kernel(x0_ref, x1_ref, scale_ref, shift_ref, out_ref):
    """Pass-2 kernel: out = (x0 + x1) * scale + shift with per-row (= per-channel) affine."""
    y = x0_ref[...].astype(jnp.float32) + x1_ref[...].astype(jnp.float32)
    out_ref[...] = (y * scale_ref[...] + shift_ref[...]).astype(out_ref.dtype)


def _choose_block_rows(n, c, hw, itemsize, max_block_rows=None):
    """Largest row block TM = TB*C with TB | N, TM % 8 == 0, fitting the VMEM budget."""
    # Normalize pass holds ~ (2 in + 1 out) double-buffered blocks of (TM, HW).
    budget_bytes = 20 * 1024 * 1024
    max_rows = max(budget_bytes // (6 * hw * itemsize), 1)
    if max_block_rows is not None:
        max_rows = min(max_rows, max_block_rows)
    best_tb = None
    for tb in range(1, n + 1):
        if n % tb:
            continue
        tm = tb * c
        if tm % 8 == 0 and tm <= max_rows:
            best_tb = tb
    if best_tb is None:
        # Fallback: single block covering the whole row axis (block == full dim is legal).
        best_tb = n
    return best_tb


def _sum_y(x0, x1, gamma, beta, *, max_block_rows=None):
    """SumY forward (linear=False): BatchNorm2d(x0 + x1) flattened to (N, C*H*W)."""
    N, C, H, W = x0.shape
    HW = H * W
    NC = N * C
    dt = x0.dtype
    itemsize = jnp.dtype(dt).itemsize

    # 2-D (N*C, HW) view: full sublane occupancy even when C < 8; lane dim = HW.
    x0r = x0.reshape(NC, HW)
    x1r = x1.reshape(NC, HW)

    TB = _choose_block_rows(N, C, HW, itemsize, max_block_rows)
    TM = TB * C                     # rows per block (whole samples -> channel = row % C)
    B = NC // TM                    # number of row blocks

    if HW % _LANE == 0 and (HW // _LANE) <= 32:
        lacc, ncol = _LANE, HW // _LANE
    else:
        lacc, ncol = 1, None

    block_bytes = TM * HW * itemsize
    vmem_need = 6 * block_bytes + 4 * TM * max(lacc, _LANE) * 4 + (2 << 20)
    vmem_limit = int(min(max(vmem_need, 16 * 1024 * 1024), 48 * 1024 * 1024))

    xspec = pl.BlockSpec((TM, HW), lambda b: (b, 0))
    acc_spec = pl.BlockSpec((TM, lacc), lambda b: (0, 0))   # resident accumulator

    # ---- Pass 1: per-local-row partial sums / sums of squares, accumulated over blocks.
    s1_acc, s2_acc = pl.pallas_call(
        _make_stats_kernel(ncol),
        grid=(B,),
        in_specs=[xspec, xspec],
        out_specs=[acc_spec, acc_spec],
        out_shape=(jax.ShapeDtypeStruct((TM, lacc), jnp.float32),
                   jax.ShapeDtypeStruct((TM, lacc), jnp.float32)),
        compiler_params=pltpu.CompilerParams(
            dimension_semantics=("arbitrary",),
            vmem_limit_bytes=vmem_limit),
    )(x0r, x1r)

    # ---- Tiny O(C) finalize (plain JAX): fold rows -> channels, build fused scale/shift.
    # Local row r of every block maps to channel r % C (TM is a multiple of C).
    s1_c = jnp.sum(jnp.sum(s1_acc, axis=1).reshape(TB, C), axis=0)     # (C,)
    s2_c = jnp.sum(jnp.sum(s2_acc, axis=1).reshape(TB, C), axis=0)     # (C,)
    count = float(N * HW)
    mean = s1_c / count
    var = jnp.maximum(s2_c / count - mean * mean, 0.0)                 # cancellation guard
    inv_std = lax.rsqrt(var + EPS)
    scale_c = gamma.astype(jnp.float32) * inv_std
    shift_c = beta.astype(jnp.float32) - mean * scale_c
    scale_rows = jnp.tile(scale_c, N).reshape(NC, 1)                   # channel = row % C
    shift_rows = jnp.tile(shift_c, N).reshape(NC, 1)

    # ---- Pass 2: normalize; fully parallel over row blocks (megacore-friendly on v7x).
    sspec = pl.BlockSpec((TM, 1), lambda b: (b, 0))
    out2d = pl.pallas_call(
        _normalize_kernel,
        grid=(B,),
        in_specs=[xspec, xspec, sspec, sspec],
        out_specs=pl.BlockSpec((TM, HW), lambda b: (b, 0)),
        out_shape=jax.ShapeDtypeStruct((NC, HW), dt),
        compiler_params=pltpu.CompilerParams(
            dimension_semantics=("parallel",),
            vmem_limit_bytes=vmem_limit),
    )(x0r, x1r, scale_rows, shift_rows)

    # Row-major reshape == torch's y.view(N, -1); no data movement.
    return out2d.reshape(N, C * HW)


sum_y = jax.jit(_sum_y, static_argnames=("max_block_rows",))


def _reference(x0, x1, gamma, beta):
    """Pure-JAX reference mirroring the PyTorch forward (training-mode BatchNorm2d)."""
    y = x0 + x1
    m = jnp.mean(y, axis=(0, 2, 3), keepdims=True)
    v = jnp.mean((y - m) ** 2, axis=(0, 2, 3), keepdims=True)   # biased variance
    yn = (y - m) / jnp.sqrt(v + EPS)
    yn = yn * gamma.reshape(1, -1, 1, 1) + beta.reshape(1, -1, 1, 1)
    return yn.reshape(y.shape[0], -1)


if __name__ == "__main__":
    root_key = jax.random.PRNGKey(0)

    def run_case(N, C, H, W, case_id, max_block_rows=None):
        k0, k1, kg, kb = jax.random.split(jax.random.fold_in(root_key, case_id), 4)
        x0 = jax.random.normal(k0, (N, C, H, W), dtype=jnp.float32)
        x1 = jax.random.normal(k1, (N, C, H, W), dtype=jnp.float32)
        gamma = 1.0 + 0.05 * jax.random.normal(kg, (C,), dtype=jnp.float32)
        beta = 0.05 * jax.random.normal(kb, (C,), dtype=jnp.float32)

        z = sum_y(x0, x1, gamma, beta, max_block_rows=max_block_rows)
        jax.block_until_ready(z)

        r = _reference(x0, x1, gamma, beta)
        assert z.shape == (N, C * H * W)
        assert jnp.allclose(z, r, atol=1e-4, rtol=1e-4), f"mismatch at {(N, C, H, W)}"

    # Primary SumY shape (pair of (2, 4, 16, 16) feature maps).
    run_case(2, 4, 16, 16, 0)
    # Forced multi-block grid: exercises cross-block stats accumulation + parallel pass 2.
    run_case(4, 4, 16, 16, 1, max_block_rows=8)
    # Non-128-multiple spatial size (HW = 64): exercises the (rows, 1) accumulator path.
    run_case(4, 8, 8, 8, 2, max_block_rows=8)

    print("KERNEL_OK")
</pallas_src>

<mosaic_0001>
module attributes {stable_mosaic.version = 11 : i64} {
  func.func @kernel(%arg0: i32, %arg1: memref<8x256xf32, #tpu.memory_space<vmem>>, %arg2: memref<8x256xf32, #tpu.memory_space<vmem>>, %arg3: memref<8x128xf32, #tpu.memory_space<vmem>>, %arg4: memref<8x128xf32, #tpu.memory_space<vmem>>) attributes {dimension_semantics = [#tpu.dimension_semantics<arbitrary>], iteration_bounds = array<i64: 1>, scalar_prefetch = 0 : i64, scratch_operands = 0 : i64, tpu.core_type = #tpu.core_type<tc>, window_params = [{transform_indices = @transform_0, window_bounds = array<i64: 8, 256>}, {transform_indices = @transform_1, window_bounds = array<i64: 8, 256>}, {pipeline_mode = #tpu.pipeline_mode<synchronous>, transform_indices = @transform_2, window_bounds = array<i64: 8, 128>}, {pipeline_mode = #tpu.pipeline_mode<synchronous>, transform_indices = @transform_3, window_bounds = array<i64: 8, 128>}]} {
    %c0_i32 = arith.constant 0 : i32
    %0 = arith.cmpi eq, %arg0, %c0_i32 : i32
    %1 = arith.extui %0 : i1 to i32
    %c0_i32_0 = arith.constant 0 : i32
    %2 = arith.cmpi ne, %1, %c0_i32_0 : i32
    scf.if %2 {
      %cst = arith.constant 0.000000e+00 : f32
      %18 = vector.broadcast %cst : f32 to vector<8x128xf32>
      %c0_12 = arith.constant 0 : index
      %c0_13 = arith.constant 0 : index
      %19 = vector.load %arg3[%c0_12, %c0_13] : memref<8x128xf32, #tpu.memory_space<vmem>>, vector<8x128xf32>
      tpu.vector_store %arg3[%c0_12, %c0_13], %18 {strides = array<i32>} : memref<8x128xf32, #tpu.memory_space<vmem>>, vector<8x128xf32>,
      %cst_14 = arith.constant 0.000000e+00 : f32
      %20 = vector.broadcast %cst_14 : f32 to vector<8x128xf32>
      %c0_15 = arith.constant 0 : index
      %c0_16 = arith.constant 0 : index
      %21 = vector.load %arg4[%c0_15, %c0_16] : memref<8x128xf32, #tpu.memory_space<vmem>>, vector<8x128xf32>
      tpu.vector_store %arg4[%c0_15, %c0_16], %20 {strides = array<i32>} : memref<8x128xf32, #tpu.memory_space<vmem>>, vector<8x128xf32>,
    } else {
    }
    %c0 = arith.constant 0 : index
    %c0_1 = arith.constant 0 : index
    %3 = vector.load %arg1[%c0, %c0_1] : memref<8x256xf32, #tpu.memory_space<vmem>>, vector<8x256xf32>
    %c0_2 = arith.constant 0 : index
    %c0_3 = arith.constant 0 : index
    %4 = vector.load %arg2[%c0_2, %c0_3] : memref<8x256xf32, #tpu.memory_space<vmem>>, vector<8x256xf32>
    %5 = arith.addf %3, %4 : vector<8x256xf32>
    %6 = vector.extract_strided_slice %5 {offsets = [0, 0], sizes = [8, 128], strides = [1, 1]} : vector<8x256xf32> to vector<8x128xf32>
    %7 = arith.mulf %6, %6 : vector<8x128xf32>
    %8 = vector.extract_strided_slice %5 {offsets = [0, 128], sizes = [8, 128], strides = [1, 1]} : vector<8x256xf32> to vector<8x128xf32>
    %9 = arith.addf %6, %8 : vector<8x128xf32>
    %10 = arith.mulf %8, %8 : vector<8x128xf32>
    %11 = arith.addf %7, %10 : vector<8x128xf32>
    %c0_4 = arith.constant 0 : index
    %c0_5 = arith.constant 0 : index
    %12 = vector.load %arg3[%c0_4, %c0_5] : memref<8x128xf32, #tpu.memory_space<vmem>>, vector<8x128xf32>
    %13 = arith.addf %12, %9 : vector<8x128xf32>
    %c0_6 = arith.constant 0 : index
    %c0_7 = arith.constant 0 : index
    %14 = vector.load %arg3[%c0_6, %c0_7] : memref<8x128xf32, #tpu.memory_space<vmem>>, vector<8x128xf32>
    tpu.vector_store %arg3[%c0_6, %c0_7], %13 {strides = array<i32>} : memref<8x128xf32, #tpu.memory_space<vmem>>, vector<8x128xf32>,
    %c0_8 = arith.constant 0 : index
    %c0_9 = arith.constant 0 : index
    %15 = vector.load %arg4[%c0_8, %c0_9] : memref<8x128xf32, #tpu.memory_space<vmem>>, vector<8x128xf32>
    %16 = arith.addf %15, %11 : vector<8x128xf32>
    %c0_10 = arith.constant 0 : index
    %c0_11 = arith.constant 0 : index
    %17 = vector.load %arg4[%c0_10, %c0_11] : memref<8x128xf32, #tpu.memory_space<vmem>>, vector<8x128xf32>
    tpu.vector_store %arg4[%c0_10, %c0_11], %16 {strides = array<i32>} : memref<8x128xf32, #tpu.memory_space<vmem>>, vector<8x128xf32>,
    return
  }
  func.func @transform_0(%arg0: i32) -> (i32, i32) {
    %c0_i32 = arith.constant 0 : i32
    %c0_i32_0 = arith.constant 0 : i32
    return %arg0, %c0_i32 : i32, i32
  }
  func.func @transform_1(%arg0: i32) -> (i32, i32) {
    %c0_i32 = arith.constant 0 : i32
    %c0_i32_0 = arith.constant 0 : i32
    return %arg0, %c0_i32 : i32, i32
  }
  func.func @transform_2(%arg0: i32) -> (i32, i32) {
    %c0_i32 = arith.constant 0 : i32
    %c0_i32_0 = arith.constant 0 : i32
    %c0_i32_1 = arith.constant 0 : i32
    return %c0_i32, %c0_i32_0 : i32, i32
  }
  func.func @transform_3(%arg0: i32) -> (i32, i32) {
    %c0_i32 = arith.constant 0 : i32
    %c0_i32_0 = arith.constant 0 : i32
    %c0_i32_1 = arith.constant 0 : i32
    return %c0_i32, %c0_i32_0 : i32, i32
  }
}

module attributes {stable_mosaic.version = 11 : i64} {
  func.func @_normalize_kernel(%arg0: i32, %arg1: memref<8x256xf32, #tpu.memory_space<vmem>>, %arg2: memref<8x256xf32, #tpu.memory_space<vmem>>, %arg3: memref<8x1xf32, #tpu.memory_space<vmem>>, %arg4: memref<8x1xf32, #tpu.memory_space<vmem>>, %arg5: memref<8x256xf32, #tpu.memory_space<vmem>>) attributes {dimension_semantics = [#tpu.dimension_semantics<parallel>], iteration_bounds = array<i64: 1>, scalar_prefetch = 0 : i64, scratch_operands = 0 : i64, tpu.core_type = #tpu.core_type<tc>, window_params = [{transform_indices = @transform_0, window_bounds = array<i64: 8, 256>}, {transform_indices = @transform_1, window_bounds = array<i64: 8, 256>}, {transform_indices = @transform_2, window_bounds = array<i64: 8, 1>}, {transform_indices = @transform_3, window_bounds = array<i64: 8, 1>}, {transform_indices = @transform_4, window_bounds = array<i64: 8, 256>}]} {
    %c0 = arith.constant 0 : index
    %c0_0 = arith.constant 0 : index
    %0 = vector.load %arg1[%c0, %c0_0] : memref<8x256xf32, #tpu.memory_space<vmem>>, vector<8x256xf32>
    %c0_1 = arith.constant 0 : index
    %c0_2 = arith.constant 0 : index
    %1 = vector.load %arg2[%c0_1, %c0_2] : memref<8x256xf32, #tpu.memory_space<vmem>>, vector<8x256xf32>
    %2 = arith.addf %0, %1 : vector<8x256xf32>
    %c0_3 = arith.constant 0 : index
    %c0_4 = arith.constant 0 : index
    %3 = vector.load %arg3[%c0_3, %c0_4] : memref<8x1xf32, #tpu.memory_space<vmem>>, vector<8x1xf32>
    %4 = vector.broadcast %3 : vector<8x1xf32> to vector<8x256xf32>
    %5 = arith.mulf %2, %4 : vector<8x256xf32>
    %c0_5 = arith.constant 0 : index
    %c0_6 = arith.constant 0 : index
    %6 = vector.load %arg4[%c0_5, %c0_6] : memref<8x1xf32, #tpu.memory_space<vmem>>, vector<8x1xf32>
    %7 = vector.broadcast %6 : vector<8x1xf32> to vector<8x256xf32>
    %8 = arith.addf %5, %7 : vector<8x256xf32>
    %c0_7 = arith.constant 0 : index
    %c0_8 = arith.constant 0 : index
    %9 = vector.load %arg5[%c0_7, %c0_8] : memref<8x256xf32, #tpu.memory_space<vmem>>, vector<8x256xf32>
    tpu.vector_store %arg5[%c0_7, %c0_8], %8 {strides = array<i32>} : memref<8x256xf32, #tpu.memory_space<vmem>>, vector<8x256xf32>,
    return
  }
  func.func @transform_0(%arg0: i32) -> (i32, i32) {
    %c0_i32 = arith.constant 0 : i32
    %c0_i32_0 = arith.constant 0 : i32
    return %arg0, %c0_i32 : i32, i32
  }
  func.func @transform_1(%arg0: i32) -> (i32, i32) {
    %c0_i32 = arith.constant 0 : i32
    %c0_i32_0 = arith.constant 0 : i32
    return %arg0, %c0_i32 : i32, i32
  }
  func.func @transform_2(%arg0: i32) -> (i32, i32) {
    %c0_i32 = arith.constant 0 : i32
    %c0_i32_0 = arith.constant 0 : i32
    return %arg0, %c0_i32 : i32, i32
  }
  func.func @transform_3(%arg0: i32) -> (i32, i32) {
    %c0_i32 = arith.constant 0 : i32
    %c0_i32_0 = arith.constant 0 : i32
    return %arg0, %c0_i32 : i32, i32
  }
  func.func @transform_4(%arg0: i32) -> (i32, i32) {
    %c0_i32 = arith.constant 0 : i32
    %c0_i32_0 = arith.constant 0 : i32
    return %arg0, %c0_i32 : i32, i32
  }
}

</mosaic_0001>

<llo_original>
// kernel: tile.18
$region0: #{tile.18}
  #allocation0 [shape = 's32[1]{0}', space=sflag, size = 0x4, scoped, tag = 'scoped memory for tile.18']
  %s0 = inlined_call_operand.vmem [shape: f32[4], index: 0, kind: input, shape index: {}]
  %s1 = inlined_call_operand.vmem [shape: f32[2,4], index: 1, kind: output, shape index: {}]
  // Predicated region
  $region2: #{tile.18} parent=0 // pred_check
    _
  $region3: #{tile.18} parent=0 // pred_check_branch
    %3 = sbr.rel (0) target = $region5
  $region4: #{tile.18} parent=0 // pred_region
    _
  $region5: #{tile.18} parent=0 // pred_fallthru
    _
  %v4 = vld [vmem:[%s0] ss:$0 sm:$0xff]
  %5 = vst [vmem:[%s1] sm:$0x3] %v4

// kernel: tile.0
$region0: #{tile.0}
  %s0 = inlined_call_operand.vmem [shape: f32[2,4], index: 0, kind: input, shape index: {}]
  %s1 = inlined_call_operand.vmem [shape: f32[8,1], index: 1, kind: output, shape index: {}]
  $region1: #{tile.0} parent=0
    #allocation0 [shape = 'u8[4096]{0}', space=vmem, size = 0x1000, scoped, tag = 'scoped mem for input reshape']
    %s3 = ssub.s32 4, 1
    %v4 = vld [vmem:[%s0] sm:%s3]
    %5 = vst [vmem:[#allocation0] sm:%s3] %v4
    %v6 = vld [vmem:[#allocation0] sm:$0x3]
    %vm7 = vcmask 7168
    %8 = vst.msk [vmem:[%s1] ss:$4 sm:$0x3] %vm7, %v6
    %v9 = vld [vmem:[#allocation0] sm:$0x3]
    %10 = vrot.lane.b32.xlu0 %v9, 127
    %v11 = vpop.permute.xlu0 %10
    %vm12 = vcmask 7168
    %s13 = scalar_lea.vmem %s1, 1
    %14 = vst.msk [vmem:[%s13] ss:$4 sm:$0x3] %vm12, %v11
    %v15 = vld [vmem:[#allocation0] sm:$0x3]
    %16 = vrot.lane.b32.xlu0 %v15, 126
    %v17 = vpop.permute.xlu0 %16
    %vm18 = vcmask 7168
    %s19 = scalar_lea.vmem %s1, 2
    %20 = vst.msk [vmem:[%s19] ss:$4 sm:$0x3] %vm18, %v17
    %v21 = vld [vmem:[#allocation0] sm:$0x3]
    %22 = vrot.lane.b32.xlu0 %v21, 125
    %v23 = vpop.permute.xlu0 %22
    %vm24 = vcmask 7168
    %s25 = scalar_lea.vmem %s1, 3
    %26 = vst.msk [vmem:[%s25] ss:$4 sm:$0x3] %vm24, %v23

// kernel: _sum_y.2
$region0: #{_sum_y.2}
  #allocation0 [shape = 'u32[]', space=smem, size = 0x4, offset = 0x4, fixed_abs, tag = 'smem constant byte address 0x4 - core index']
  #allocation1 [shape = 'u32[72,128]{1,0:T(1,128)}', space=vmem, size = 0x9000, scoped, tag = 'internal scratch']
  %s0 = inlined_call_operand.vmem [shape: f32[8,256], index: 0, kind: input, shape index: {}]
  %s1 = inlined_call_operand.vmem [shape: f32[8,256], index: 1, kind: input, shape index: {}]
  %s2 = inlined_call_operand.vmem [shape: f32[8,128], index: 2, kind: output, shape index: {0}]
  %s3 = inlined_call_operand.vmem [shape: f32[8,128], index: 3, kind: output, shape index: {1}]
  %4 = xla_tuple %s2, %s3
  %s5 = sld [smem:[#allocation0]]
  $region30: #{_sum_y.2} parent=0
    _
  %s7 = ssub.s32 1, %s5
  %s8 = scalar_select 0, %s7, %s5
  // Predicated region
  $region2: #{_sum_y.2} parent=0 // pred_check
    _
  $region3: #{_sum_y.2} parent=0 // pred_check_branch
    %10 = sbr.rel (0) target = $region5
  $region4: #{_sum_y.2} parent=0 // pred_region
    _
  $region5: #{_sum_y.2} parent=0 // pred_fallthru
    _
  // Predicated region
  $region6: #{_sum_y.2} parent=0 // pred_check
    _
  $region7: #{_sum_y.2} parent=0 // pred_check_branch
    %12 = sbr.rel (0) target = $region9
  $region8: #{_sum_y.2} parent=0 // pred_region
    _
  $region9: #{_sum_y.2} parent=0 // pred_fallthru
    _
  %p13 = scmp.eq.s32.totalorder 0, 0
  // Predicated region
  $region10: #{_sum_y.2} parent=0 // pred_check
    %p14 = pneg %p13
  $region11: #{_sum_y.2} parent=0 // pred_check_branch
    %16 = sbr.rel (%p14) target = $region13
  $region12: #{_sum_y.2} parent=0 // pred_region
    %17 = vst [vmem:[%s2] sm:$0xff] 0.0
    %18 = vst [vmem:[%s3] sm:$0xff] 0.0
  $region13: #{_sum_y.2} parent=0 // pred_fallthru
    _
  %v19 = vld [vmem:[%s0] sm:$0xff]
  %v20 = vld [vmem:[%s0 + $0x8] sm:$0xff]
  %v21 = vld [vmem:[%s1] sm:$0xff]
  %v22 = vld [vmem:[%s1 + $0x8] sm:$0xff]
  %v23 = vadd.f32 %v19, %v21
  %v24 = vadd.f32 %v20, %v22
  %v25 = vmul.f32 %v23, %v23
  %v26 = vadd.f32 %v23, %v24
  %v27 = vmul.f32 %v24, %v24
  %v28 = vadd.f32 %v25, %v27
  %v29 = vld [vmem:[%s2] sm:$0xff]
  %v30 = vadd.f32 %v29, %v26
  %31 = vst [vmem:[%s2] sm:$0xff] %v30
  %v32 = vld [vmem:[%s3] sm:$0xff]
  %v33 = vadd.f32 %v32, %v28
  %34 = vst [vmem:[%s3] sm:$0xff] %v33
  // Predicated region
  $region14: #{_sum_y.2} parent=0 // pred_check
    _
  $region15: #{_sum_y.2} parent=0 // pred_check_branch
    %36 = sbr.rel (0) target = $region17
  $region16: #{_sum_y.2} parent=0 // pred_region
    _
  $region17: #{_sum_y.2} parent=0 // pred_fallthru
    _
  // Predicated region
  $region18: #{_sum_y.2} parent=0 // pred_check
    _
  $region19: #{_sum_y.2} parent=0 // pred_check_branch
    %38 = sbr.rel (0) target = $region21
  $region20: #{_sum_y.2} parent=0 // pred_region
    _
  $region21: #{_sum_y.2} parent=0 // pred_fallthru
    _
  // Predicated region
  $region22: #{_sum_y.2} parent=0 // pred_check
    _
  $region23: #{_sum_y.2} parent=0 // pred_check_branch
    %40 = sbr.rel (0) target = $region25
  $region24: #{_sum_y.2} parent=0 // pred_region
    _
  $region25: #{_sum_y.2} parent=0 // pred_fallthru
    _
  // Predicated region
  $region26: #{_sum_y.2} parent=0 // pred_check
    _
  $region27: #{_sum_y.2} parent=0 // pred_check_branch
    %42 = sbr.rel (0) target = $region29
  $region28: #{_sum_y.2} parent=0 // pred_region
    _
  $region29: #{_sum_y.2} parent=0 // pred_fallthru
    _

// kernel: _sum_y.3
$region0: #{_sum_y.3}
  #allocation0 [shape = 'u32[]', space=smem, size = 0x4, offset = 0x4, fixed_abs, tag = 'smem constant byte address 0x4 - core index']
  #allocation1 [shape = 'u32[72,128]{1,0:T(1,128)}', space=vmem, size = 0x9000, scoped, tag = 'internal scratch']
  %s0 = inlined_call_operand.vmem [shape: f32[8,256], index: 0, kind: input, shape index: {}]
  %s1 = inlined_call_operand.vmem [shape: f32[8,256], index: 1, kind: input, shape index: {}]
  %s2 = inlined_call_operand.vmem [shape: f32[8,1], index: 2, kind: input, shape index: {}]
  %s3 = inlined_call_operand.vmem [shape: f32[8,1], index: 3, kind: input, shape index: {}]
  %s4 = inlined_call_operand.vmem [shape: f32[8,256], index: 4, kind: output, shape index: {}]
  %s5 = sld [smem:[#allocation0]]
  $region26: #{_sum_y.3} parent=0
    _
  %s7 = ssub.s32 1, %s5
  %s8 = scalar_select 0, %s7, %s5
  // Predicated region
  $region2: #{_sum_y.3} parent=0 // pred_check
    _
  $region3: #{_sum_y.3} parent=0 // pred_check_branch
    %10 = sbr.rel (0) target = $region5
  $region4: #{_sum_y.3} parent=0 // pred_region
    _
  $region5: #{_sum_y.3} parent=0 // pred_fallthru
    _
  // Predicated region
  $region6: #{_sum_y.3} parent=0 // pred_check
    _
  $region7: #{_sum_y.3} parent=0 // pred_check_branch
    %12 = sbr.rel (0) target = $region9
  $region8: #{_sum_y.3} parent=0 // pred_region
    _
  $region9: #{_sum_y.3} parent=0 // pred_fallthru
    _
  // Predicated region
  $region10: #{_sum_y.3} parent=0 // pred_check
    _
  $region11: #{_sum_y.3} parent=0 // pred_check_branch
    %14 = sbr.rel (0) target = $region13
  $region12: #{_sum_y.3} parent=0 // pred_region
    _
  $region13: #{_sum_y.3} parent=0 // pred_fallthru
    _
  // Predicated region
  $region14: #{_sum_y.3} parent=0 // pred_check
    _
  $region15: #{_sum_y.3} parent=0 // pred_check_branch
    %16 = sbr.rel (0) target = $region17
  $region16: #{_sum_y.3} parent=0 // pred_region
    _
  $region17: #{_sum_y.3} parent=0 // pred_fallthru
    _
  %v17 = vld [vmem:[%s0] sm:$0xff]
  %v18 = vld [vmem:[%s0 + $0x8] sm:$0xff]
  %v19 = vld [vmem:[%s1] sm:$0xff]
  %v20 = vld [vmem:[%s1 + $0x8] sm:$0xff]
  %v21 = vadd.f32 %v17, %v19
  %v22 = vadd.f32 %v18, %v20
  %v23 = vld [vmem:[%s2] sm:$0xff]
  %25 = vset.pattern.permute.xlu0 0
  %26 = vperm.xlu0 %25, %v23
  %v27 = vpop.permute.xlu0 %26
  %v29 = vmul.f32 %v21, %v27
  %v30 = vmul.f32 %v22, %v27
  %v31 = vld [vmem:[%s3] sm:$0xff]
  %33 = vset.pattern.permute.xlu0 0
  %34 = vperm.xlu0 %33, %v31
  %v35 = vpop.permute.xlu0 %34
  %v37 = vadd.f32 %v29, %v35
  %v38 = vadd.f32 %v30, %v35
  %39 = vst [vmem:[%s4] sm:$0xff] %v37
  %40 = vst [vmem:[%s4 + $0x8] sm:$0xff] %v38
  // Predicated region
  $region18: #{_sum_y.3} parent=0 // pred_check
    _
  $region19: #{_sum_y.3} parent=0 // pred_check_branch
    %42 = sbr.rel (0) target = $region21
  $region20: #{_sum_y.3} parent=0 // pred_region
    _
  $region21: #{_sum_y.3} parent=0 // pred_fallthru
    _
  // Predicated region
  $region22: #{_sum_y.3} parent=0 // pred_check
    _
  $region23: #{_sum_y.3} parent=0 // pred_check_branch
    %44 = sbr.rel (0) target = $region25
  $region24: #{_sum_y.3} parent=0 // pred_region
    _
  $region25: #{_sum_y.3} parent=0 // pred_fallthru
    _

</llo_original>
